<compile_context>
chip_gen: v6e
topology: v6e:2x2x1
jax: 0.10.0
libtpu: 0.0.40
codegen_flags: <defaults>
</compile_context>

<pallas_src>
import functools
import math

import jax
import jax.numpy as jnp
from jax.experimental import pallas as pl
from jax.experimental.pallas import tpu as pltpu

d_k = d_v = 64  # module-level constants from the PyTorch spec


def _sdpa_kernel(q_ref, k_ref, v_ref, mask_ref, *out_refs,
                 scale, dv, with_attn, mxu_dtype):
    # q_ref: (TQ, Dk), k_ref: (Sk, Dk), v_ref: (Sk, Dv+1) (last column = ones),
    # mask_ref: (TQ, Sk) int8.
    ctx_ref = out_refs[0]
    attn_ref = out_refs[1] if with_attn else None

    q = q_ref[...]
    k = k_ref[...]
    v = v_ref[...]
    if mxu_dtype is not None:           # opt-in precision trade (v6e bf16 MXU path)
        q = q.astype(mxu_dtype)
        k = k.astype(mxu_dtype)
        v = v.astype(mxu_dtype)

    # Fold 1/sqrt(d_k) into Q (exact: 0.125) -> (TQ, Dk) mul instead of (TQ, Sk).
    q = q * scale

    # scores = (Q * scale) @ K^T -- contraction on Dk, no explicit transpose.
    scores = jax.lax.dot_general(
        q, k,
        dimension_numbers=(((1,), (1,)), ((), ())),
        preferred_element_type=jnp.float32,
    )

    # masked_fill_(attn_mask, -1e9)
    scores = jnp.where(mask_ref[...] != 0, jnp.float32(-1e9), scores)

    # numerically-stable softmax; denominator comes out of the PV matmul (ones column).
    m = jnp.max(scores, axis=-1, keepdims=True)
    e = jnp.exp(scores - m)

    pv = jnp.dot(e.astype(v.dtype), v, preferred_element_type=jnp.float32)  # (TQ, Dv+1)
    inv = pl.reciprocal(pv[:, dv:], approx=False)   # exact: attn checked to 1e-5

    ctx_ref[...] = (pv[:, :dv] * inv).astype(ctx_ref.dtype)
    if with_attn:
        attn_ref[...] = (e * inv).astype(attn_ref.dtype)


def _round_up(x, m):
    return ((x + m - 1) // m) * m


def _vmem_capacity_bytes():
    try:
        return int(pltpu.get_tpu_info().vmem_capacity_bytes)
    except Exception:
        return 64 * 1024 * 1024  # conservative fallback (v7x physical VMEM)


def _step_vmem_bytes(tq, sk, dk, dv, q_bytes, kv_bytes, attn_bytes):
    kv = 2 * sk * (dk + dv + 1) * kv_bytes    # K and V' double-buffers (resident)
    qb = 2 * tq * dk * q_bytes                # Q tiles
    mask = 2 * tq * sk                        # int8 mask tiles
    ctx = 2 * tq * dv * 4                     # ctx out (<= f32)
    attn = 2 * tq * sk * attn_bytes           # attn out double-buffer (0 if elided)
    temps = 12 * tq * sk                      # live f32 scores / e / where temps
    return kv + qb + mask + ctx + attn + temps


def _choose_tq(sq, sk, dk, dv, q_bytes, kv_bytes, attn_bytes, budget):
    sq8 = _round_up(sq, 8)
    for t in (512, 256, 128, 64, 32, 16, 8):
        if t > sq8:
            continue
        if _step_vmem_bytes(t, sk, dk, dv, q_bytes, kv_bytes, attn_bytes) <= budget:
            return t
    # TODO(synk): if even tq=8 exceeds the budget (very long Sk), an inner flash-style
    # Sk grid axis with running max/sum would be required; fall back to the smallest tile.
    return 8


def scaled_dot_product_attention(Q, K, V, attn_mask, *,
                                 return_attn=True,
                                 attn_dtype=jnp.float32,
                                 mxu_dtype=None):
    """Q: [B,H,Sq,Dk], K: [B,H,Sk,Dk], V: [B,H,Sk,Dv],
    attn_mask: [Sq,Sk] | [1,1,Sq,Sk] | [B,H,Sq,Sk] (bool/int, True/nonzero = masked).

    Returns (context [B,H,Sq,Dv] in Q.dtype, attn [B,H,Sq,Sk] in attn_dtype)
    or just context if return_attn=False."""
    B, H, Sq, Dk = Q.shape
    Sk = K.shape[2]
    Dv = V.shape[3]
    BH = B * H

    # Module divides by sqrt(d_k)=8; Dk == d_k in all uses, so derive from the shape.
    scale = 1.0 / math.sqrt(Dk)

    # Native dtypes: no f32 upcast of Q/K/V.
    q = Q.reshape(BH, Sq, Dk)
    k = K.reshape(BH, Sk, Dk)
    # Denominator fold: V' = [V | 1] so e @ V' yields ctx and the softmax row-sum
    # in one MXU op (the extra column is free: N=64 under-fills the MXU output).
    v = jnp.concatenate([V.reshape(BH, Sk, Dv), jnp.ones((BH, Sk, 1), V.dtype)], axis=-1)

    # Mask: 1 byte/score; use a shared 2-D tile when the mask is B/H-broadcast so we
    # never materialize a BH x Sq x Sk array in the wrapper.
    mask = attn_mask
    if mask.ndim == 2:
        shared_mask = True
    elif mask.ndim == 4 and mask.shape[0] == 1 and mask.shape[1] == 1:
        shared_mask = True
        mask = mask.reshape(Sq, Sk)
    elif mask.ndim == 4:
        shared_mask = False
        mask = jnp.broadcast_to(mask, (B, H, Sq, Sk)).reshape(BH, Sq, Sk)
    else:
        raise ValueError(f"unsupported attn_mask rank: {mask.ndim}")
    mask = (mask != 0).astype(jnp.int8)

    # Tile sizing from a per-generation VMEM budget; never rely on the default scoped limit.
    cap = _vmem_capacity_bytes()
    budget = (cap * 3) // 4                      # ~48 MiB on v7x, ~96 MiB on v5e/v6e
    q_bytes = Q.dtype.itemsize
    kv_bytes = V.dtype.itemsize
    attn_bytes = jnp.dtype(attn_dtype).itemsize if return_attn else 0
    tq = _choose_tq(Sq, Sk, Dk, Dv, q_bytes, kv_bytes, attn_bytes, budget)
    footprint = _step_vmem_bytes(tq, Sk, Dk, Dv, q_bytes, kv_bytes, attn_bytes)
    vmem_limit = int(min(max(budget, footprint + (2 << 20)), cap))

    # Pad ragged Sq up to a tile multiple (padded rows are discarded after the call).
    Sq_pad = _round_up(Sq, tq)
    if Sq_pad != Sq:
        q = jnp.pad(q, ((0, 0), (0, Sq_pad - Sq), (0, 0)))
        if shared_mask:
            mask = jnp.pad(mask, ((0, Sq_pad - Sq), (0, 0)))
        else:
            mask = jnp.pad(mask, ((0, 0), (0, Sq_pad - Sq), (0, 0)))

    grid = (BH, Sq_pad // tq)

    if shared_mask:
        mask_spec = pl.BlockSpec((tq, Sk), lambda bh, qi: (qi, 0))
    else:
        mask_spec = pl.BlockSpec((None, tq, Sk), lambda bh, qi: (bh, qi, 0))

    ctx_shape = jax.ShapeDtypeStruct((BH, Sq_pad, Dv), Q.dtype)
    ctx_spec = pl.BlockSpec((None, tq, Dv), lambda bh, qi: (bh, qi, 0))
    if return_attn:
        out_shape = (ctx_shape, jax.ShapeDtypeStruct((BH, Sq_pad, Sk), attn_dtype))
        out_specs = [ctx_spec, pl.BlockSpec((None, tq, Sk), lambda bh, qi: (bh, qi, 0))]
    else:
        out_shape = ctx_shape
        out_specs = ctx_spec

    kernel = functools.partial(_sdpa_kernel, scale=scale, dv=Dv,
                               with_attn=return_attn, mxu_dtype=mxu_dtype)

    outs = pl.pallas_call(
        kernel,
        out_shape=out_shape,
        grid_spec=pltpu.PrefetchScalarGridSpec(
            num_scalar_prefetch=0,
            grid=grid,
            in_specs=[
                # Q: indexed by (head, Sq-tile); leading head dim squeezed.
                pl.BlockSpec((None, tq, Dk), lambda bh, qi: (bh, qi, 0)),
                # K / V': same block for every Sq tile -> resident across the inner axis.
                pl.BlockSpec((None, Sk, Dk), lambda bh, qi: (bh, 0, 0)),
                pl.BlockSpec((None, Sk, Dv + 1), lambda bh, qi: (bh, 0, 0)),
                mask_spec,
            ],
            out_specs=out_specs,
        ),
        compiler_params=pltpu.CompilerParams(
            # Shard the head axis across TensorCores (v7x megacore); keep the Sq axis
            # sequential per core so resident K/V is fetched exactly once per (bh, core).
            dimension_semantics=("parallel", "arbitrary"),
            vmem_limit_bytes=vmem_limit,
        ),
    )(q, k, v, mask)

    if return_attn:
        ctx, attn = outs
        ctx = ctx[:, :Sq].reshape(B, H, Sq, Dv)
        attn = attn[:, :Sq].reshape(B, H, Sq, Sk)
        return ctx, attn
    ctx = outs[:, :Sq].reshape(B, H, Sq, Dv)
    return ctx


def _reference(Q, K, V, attn_mask):
    scores = jnp.einsum("bhqd,bhkd->bhqk", Q, K) / math.sqrt(Q.shape[-1])
    scores = jnp.where(attn_mask, -1e9, scores)
    attn = jax.nn.softmax(scores, axis=-1)
    context = jnp.einsum("bhqk,bhkd->bhqd", attn, V)
    return context, attn


if __name__ == "__main__":
    key = jax.random.PRNGKey(0)
    kq, kk, kv, km, kq2, kk2, kv2 = jax.random.split(key, 7)

    # --- case 1: square self-attention with a per-head (4-D) mask, like the module sees.
    B, H, S = 2, 2, 8
    Q = jax.random.normal(kq, (B, H, S, d_k), dtype=jnp.float32)
    K = jax.random.normal(kk, (B, H, S, d_k), dtype=jnp.float32)
    V = jax.random.normal(kv, (B, H, S, d_v), dtype=jnp.float32)
    causal = jnp.triu(jnp.ones((S, S), dtype=jnp.bool_), k=1)
    full_mask = jnp.broadcast_to(causal, (B, H, S, S))

    ctx, attn = scaled_dot_product_attention(Q, K, V, full_mask)
    jax.block_until_ready((ctx, attn))
    ref_ctx, ref_attn = _reference(Q, K, V, full_mask)
    assert jnp.allclose(ctx, ref_ctx, atol=1e-4, rtol=1e-4), "case1 context mismatch"
    assert jnp.allclose(attn, ref_attn, atol=1e-5, rtol=1e-5), "case1 attn mismatch"

    # --- case 2: ragged Sq (padding path) + shared 2-D mask (no BH broadcast in wrapper).
    Sq2, Sk2 = 12, 16
    Q2 = jax.random.normal(kq2, (B, H, Sq2, d_k), dtype=jnp.float32)
    K2 = jax.random.normal(kk2, (B, H, Sk2, d_k), dtype=jnp.float32)
    V2 = jax.random.normal(kv2, (B, H, Sk2, d_v), dtype=jnp.float32)
    mask2 = jax.random.uniform(km, (Sq2, Sk2)) > 0.7

    ctx2, attn2 = scaled_dot_product_attention(Q2, K2, V2, mask2)
    jax.block_until_ready((ctx2, attn2))
    ref_ctx2, ref_attn2 = _reference(Q2, K2, V2, mask2)
    assert jnp.allclose(ctx2, ref_ctx2, atol=1e-4, rtol=1e-4), "case2 context mismatch"
    assert jnp.allclose(attn2, ref_attn2, atol=1e-5, rtol=1e-5), "case2 attn mismatch"

    # --- case 3: fast path that elides the attn writeback entirely.
    ctx3 = scaled_dot_product_attention(Q, K, V, full_mask, return_attn=False)
    jax.block_until_ready(ctx3)
    assert jnp.allclose(ctx3, ref_ctx, atol=1e-4, rtol=1e-4), "case3 context mismatch"

    print("KERNEL_OK")
</pallas_src>

<mosaic_0001>
module attributes {stable_mosaic.version = 11 : i64} {
  func.func @_sdpa_kernel(%arg0: i32, %arg1: i32, %arg2: memref<1x8x64xf32, #tpu.memory_space<vmem>>, %arg3: memref<1x8x64xf32, #tpu.memory_space<vmem>>, %arg4: memref<1x8x65xf32, #tpu.memory_space<vmem>>, %arg5: memref<1x8x8xi8, #tpu.memory_space<vmem>>, %arg6: memref<1x8x64xf32, #tpu.memory_space<vmem>>, %arg7: memref<1x8x8xf32, #tpu.memory_space<vmem>>) attributes {dimension_semantics = [#tpu.dimension_semantics<parallel>, #tpu.dimension_semantics<arbitrary>], iteration_bounds = array<i64: 4, 1>, scalar_prefetch = 0 : i64, scratch_operands = 0 : i64, tpu.core_type = #tpu.core_type<tc>, window_params = [{transform_indices = @transform_0, window_bounds = array<i64: 1, 8, 64>}, {transform_indices = @transform_1, window_bounds = array<i64: 1, 8, 64>}, {transform_indices = @transform_2, window_bounds = array<i64: 1, 8, 65>}, {transform_indices = @transform_3, window_bounds = array<i64: 1, 8, 8>}, {transform_indices = @transform_4, window_bounds = array<i64: 1, 8, 64>}, {transform_indices = @transform_5, window_bounds = array<i64: 1, 8, 8>}]} {
    %c0 = arith.constant 0 : index
    %c0_0 = arith.constant 0 : index
    %c0_1 = arith.constant 0 : index
    %0 = vector.load %arg2[%c0, %c0_0, %c0_1] : memref<1x8x64xf32, #tpu.memory_space<vmem>>, vector<1x8x64xf32>
    %1 = vector.shape_cast %0 : vector<1x8x64xf32> to vector<8x64xf32>
    %c0_2 = arith.constant 0 : index
    %c0_3 = arith.constant 0 : index
    %c0_4 = arith.constant 0 : index
    %2 = vector.load %arg3[%c0_2, %c0_3, %c0_4] : memref<1x8x64xf32, #tpu.memory_space<vmem>>, vector<1x8x64xf32>
    %3 = vector.shape_cast %2 : vector<1x8x64xf32> to vector<8x64xf32>
    %c0_5 = arith.constant 0 : index
    %c0_6 = arith.constant 0 : index
    %c0_7 = arith.constant 0 : index
    %4 = vector.load %arg4[%c0_5, %c0_6, %c0_7] : memref<1x8x65xf32, #tpu.memory_space<vmem>>, vector<1x8x65xf32>
    %5 = vector.shape_cast %4 : vector<1x8x65xf32> to vector<8x65xf32>
    %cst = arith.constant 1.250000e-01 : f32
    %6 = vector.broadcast %cst : f32 to vector<8x64xf32>
    %7 = arith.mulf %1, %6 : vector<8x64xf32>
    %cst_8 = arith.constant dense<0.000000e+00> : vector<8x8xf32>
    %8 = tpu.matmul %7, %3, %cst_8 {dimension_numbers = #tpu.dot_dimension_numbers<[1], [1], [0], [0], [0, 0, 1, 0], [], []>} : vector<8x64xf32>, vector<8x64xf32>, vector<8x8xf32> -> vector<8x8xf32>
    %c0_9 = arith.constant 0 : index
    %c0_10 = arith.constant 0 : index
    %c0_11 = arith.constant 0 : index
    %9 = vector.load %arg5[%c0_9, %c0_10, %c0_11] : memref<1x8x8xi8, #tpu.memory_space<vmem>>, vector<1x8x8xi8>
    %10 = vector.shape_cast %9 : vector<1x8x8xi8> to vector<8x8xi8>
    %c0_i8 = arith.constant 0 : i8
    %11 = vector.broadcast %c0_i8 : i8 to vector<8x8xi8>
    %12 = arith.cmpi ne, %10, %11 : vector<8x8xi8>
    %cst_12 = arith.constant -1.000000e+09 : f32
    %13 = vector.broadcast %cst_12 : f32 to vector<8x8xf32>
    %14 = arith.select %12, %13, %8 : vector<8x8xi1>, vector<8x8xf32>
    %cst_13 = arith.constant dense<0xFF800000> : vector<8xf32>
    %15 = vector.multi_reduction <maximumf>, %14, %cst_13 [1] : vector<8x8xf32> to vector<8xf32>
    %16 = vector.shape_cast %15 : vector<8xf32> to vector<8x1xf32>
    %17 = vector.broadcast %16 : vector<8x1xf32> to vector<8x8xf32>
    %18 = arith.subf %14, %17 : vector<8x8xf32>
    %19 = math.exp %18 : vector<8x8xf32>
    %cst_14 = arith.constant dense<0.000000e+00> : vector<8x65xf32>
    %20 = tpu.matmul %19, %5, %cst_14 {dimension_numbers = #tpu.dot_dimension_numbers<[1], [0], [0], [1], [0, 0, 1, 1], [], []>} : vector<8x8xf32>, vector<8x65xf32>, vector<8x65xf32> -> vector<8x65xf32>
    %21 = vector.extract_strided_slice %20 {offsets = [0, 64], sizes = [8, 1], strides = [1, 1]} : vector<8x65xf32> to vector<8x1xf32>
    %22 = tpu.reciprocal %21 : vector<8x1xf32> -> vector<8x1xf32>
    %23 = vector.extract_strided_slice %20 {offsets = [0, 0], sizes = [8, 64], strides = [1, 1]} : vector<8x65xf32> to vector<8x64xf32>
    %24 = vector.broadcast %22 : vector<8x1xf32> to vector<8x64xf32>
    %25 = arith.mulf %23, %24 : vector<8x64xf32>
    %c0_15 = arith.constant 0 : index
    %c0_16 = arith.constant 0 : index
    %c0_17 = arith.constant 0 : index
    %26 = vector.load %arg6[%c0_15, %c0_16, %c0_17] : memref<1x8x64xf32, #tpu.memory_space<vmem>>, vector<1x8x64xf32>
    %27 = vector.shape_cast %26 : vector<1x8x64xf32> to vector<8x64xf32>
    %28 = vector.shape_cast %25 : vector<8x64xf32> to vector<1x8x64xf32>
    tpu.vector_store %arg6[%c0_15, %c0_16, %c0_17], %28 {strides = array<i32>} : memref<1x8x64xf32, #tpu.memory_space<vmem>>, vector<1x8x64xf32>,
    %29 = vector.broadcast %22 : vector<8x1xf32> to vector<8x8xf32>
    %30 = arith.mulf %19, %29 : vector<8x8xf32>
    %c0_18 = arith.constant 0 : index
    %c0_19 = arith.constant 0 : index
    %c0_20 = arith.constant 0 : index
    %31 = vector.load %arg7[%c0_18, %c0_19, %c0_20] : memref<1x8x8xf32, #tpu.memory_space<vmem>>, vector<1x8x8xf32>
    %32 = vector.shape_cast %31 : vector<1x8x8xf32> to vector<8x8xf32>
    %33 = vector.shape_cast %30 : vector<8x8xf32> to vector<1x8x8xf32>
    tpu.vector_store %arg7[%c0_18, %c0_19, %c0_20], %33 {strides = array<i32>} : memref<1x8x8xf32, #tpu.memory_space<vmem>>, vector<1x8x8xf32>,
    return
  }
  func.func @transform_0(%arg0: i32, %arg1: i32) -> (i32, i32, i32) {
    %c0_i32 = arith.constant 0 : i32
    %c0_i32_0 = arith.constant 0 : i32
    return %arg0, %arg1, %c0_i32 : i32, i32, i32
  }
  func.func @transform_1(%arg0: i32, %arg1: i32) -> (i32, i32, i32) {
    %c0_i32 = arith.constant 0 : i32
    %c0_i32_0 = arith.constant 0 : i32
    %c0_i32_1 = arith.constant 0 : i32
    return %arg0, %c0_i32, %c0_i32_0 : i32, i32, i32
  }
  func.func @transform_2(%arg0: i32, %arg1: i32) -> (i32, i32, i32) {
    %c0_i32 = arith.constant 0 : i32
    %c0_i32_0 = arith.constant 0 : i32
    %c0_i32_1 = arith.constant 0 : i32
    return %arg0, %c0_i32, %c0_i32_0 : i32, i32, i32
  }
  func.func @transform_3(%arg0: i32, %arg1: i32) -> (i32, i32, i32) {
    %c0_i32 = arith.constant 0 : i32
    %c0_i32_0 = arith.constant 0 : i32
    return %arg0, %arg1, %c0_i32 : i32, i32, i32
  }
  func.func @transform_4(%arg0: i32, %arg1: i32) -> (i32, i32, i32) {
    %c0_i32 = arith.constant 0 : i32
    %c0_i32_0 = arith.constant 0 : i32
    return %arg0, %arg1, %c0_i32 : i32, i32, i32
  }
  func.func @transform_5(%arg0: i32, %arg1: i32) -> (i32, i32, i32) {
    %c0_i32 = arith.constant 0 : i32
    %c0_i32_0 = arith.constant 0 : i32
    return %arg0, %arg1, %c0_i32 : i32, i32, i32
  }
}

</mosaic_0001>

<llo_original>
// kernel: tpu_custom_call.1
$region0: #{tpu_custom_call.1}
  #allocation0 [shape = 'u32[]', space=smem, size = 0x4, offset = 0x4, fixed_abs, tag = 'smem constant byte address 0x4 - core index']
  #allocation1 [shape = 'u32[144,128]{1,0:T(1,128)}', space=vmem, size = 0x12000, scoped, tag = 'internal scratch']
  %s0 = inlined_call_operand.hbm [shape: f32[4,8,64], index: 0, kind: input, shape index: {}]
  %s1 = inlined_call_operand.hbm [shape: f32[4,8,64], index: 1, kind: input, shape index: {}]
  %s2 = inlined_call_operand.hbm [shape: f32[4,8,65], index: 2, kind: input, shape index: {}]
  %s3 = inlined_call_operand.hbm [shape: s8[4,8,8], index: 3, kind: input, shape index: {}]
  %s4 = inlined_call_operand.hbm [shape: f32[4,8,64], index: 4, kind: output, shape index: {0}]
  %s5 = inlined_call_operand.hbm [shape: f32[4,8,8], index: 5, kind: output, shape index: {1}]
  %6 = xla_tuple %s4, %s5
  %s7 = sld [smem:[#allocation0]]
  $region73: #{tpu_custom_call.1} parent=0
    _
  %s9 = ssub.s32 1, %s7
  %s10 = scalar_select 0, %s9, %s7
  $region1: #{tpu_custom_call.1} parent=0
    #allocation2 [shape = 'u8[8192]{0}', space=vmem, size = 0x2000, scoped, tag = 'input window, operand 0']
    #allocation3 [shape = 's32[2]{0}', space=sflag, size = 0x8, scoped, tag = 'scoped memory for tpu_custom_call.1']
    #allocation4 [shape = 's32[2]{0}', space=sflag, size = 0x8, scoped, tag = 'scoped memory for tpu_custom_call.1']
    #allocation5 [shape = 'u8[8192]{0}', space=vmem, size = 0x2000, scoped, tag = 'input window, operand 1']
    #allocation6 [shape = 's32[2]{0}', space=sflag, size = 0x8, scoped, tag = 'scoped memory for tpu_custom_call.1']
    #allocation7 [shape = 'u8[8192]{0}', space=vmem, size = 0x2000, scoped, tag = 'input window, operand 2']
    #allocation8 [shape = 'u8[2048]{0}', space=vmem, size = 0x800, scoped, tag = 'input window, operand 3']
    #allocation9 [shape = 's32[2]{0}', space=sflag, size = 0x8, scoped, tag = 'scoped memory for tpu_custom_call.1']
    #allocation10 [shape = 'u8[8192]{0}', space=vmem, size = 0x2000, scoped, tag = 'output window, operand 0']
    #allocation11 [shape = 'u8[8192]{0}', space=vmem, size = 0x2000, scoped, tag = 'output window, operand 1']
    #allocation12 [shape = 's32[2]{0}', space=sflag, size = 0x8, scoped, tag = 'scoped memory for tpu_custom_call.1']
    %11 = vsyncpa [#allocation3], 0
    %s12 = scalar_lea.sflag [#allocation3], 1
    %13 = vsyncpa %s12, 0
    %14 = vsyncpa [#allocation6], 0
    %s15 = scalar_lea.sflag [#allocation6], 1
    %16 = vsyncpa %s15, 0
    %17 = vsyncpa [#allocation9], 0
    %s18 = scalar_lea.sflag [#allocation9], 1
    %19 = vsyncpa %s18, 0
    %20 = vsyncpa [#allocation4], 0
    %s21 = scalar_lea.sflag [#allocation4], 1
    %22 = vsyncpa %s21, 0
    %23 = vsyncpa [#allocation12], 0
    %s24 = scalar_lea.sflag [#allocation12], 1
    %25 = vsyncpa %s24, 0
    loop: start=0, step=1, limit=6
    $region2: #{tpu_custom_call.1} parent=1 // loop_pre_header
      _
    $region3: #{tpu_custom_call.1} parent=1 // loop_header
      %s27 = sphi 0, %s31
      %p28 = scmp.ge.s32.totalorder %s27, 6
      %s34 = sphi 0, %s46
      %s35 = sphi 0, %s42
      %s36 = sphi 0, %s34
      %s37 = sphi 0, %s35
      %s38 = sphi 0, %s36
      %s39 = sphi 0, %s37
      %s51 = sphi 0, %s53
      %s54 = sphi 0, %s51
      %s55 = sphi 0, %s54
      %s71 = sphi 0, %s55
      %s77 = sphi 0, %s79
      %s80 = sphi 0, %s77
      %s81 = sphi 0, %s80
      %s97 = sphi 0, %s81
      %s103 = sphi 0, %s105
      %s106 = sphi 0, %s103
      %s107 = sphi 0, %s106
      %s123 = sphi 0, %s107
      %s131 = sphi 0, %s133
      %s134 = sphi 0, %s131
      %s135 = sphi 0, %s134
      %s151 = sphi 0, %s135
      %s159 = sphi 0, %s161
      %s162 = sphi 0, %s159
      %s163 = sphi 0, %s162
      %s179 = sphi 0, %s163
      %s187 = sphi 0, %s189
      %s190 = sphi 0, %s187
      %s191 = sphi 0, %s190
      %s207 = sphi 0, %s191
    $region4: #{tpu_custom_call.1} parent=1 // loop_header_branch
      %30 = sbr.rel (%p28) target = $region8
    $region5: #{tpu_custom_call.1} parent=1 // loop_body
      %s32 = ssub.s32 %s27, 1
      %s33 = ssub.s32 %s27, 2
      %s40 = sadd.s32 1, %s35
      %p41 = scmp.ge.s32.totalorder %s40, 1
      %s42 = scalar_select %p41, 0, %s40
      %s43 = sadd.s32 1, %s34
      %s44 = scalar_select %p41, %s43, %s34
      %p45 = scmp.ge.s32.totalorder %s44, 4
      %s46 = scalar_select %p45, 0, %s44
      %s47 = ssub.s32 %s34, %s46
      %s48 = ssub.s32 %s35, %s42
      %s49 = sor.u32 %s47, %s48
      %p50 = scmp.eq.s32.totalorder %s49, 0
      %s52 = sadd.s32 %s51, 1
      %s53 = scalar_select %p50, %s51, %s52
      %p56 = pneg %p50
      %p57 = scmp.eq.s32.totalorder %s27, 3
      %p58 = por %p56, %p57
      %p59 = scmp.ne.s32.totalorder %s51, %s54
      %p60 = scmp.eq.s32.totalorder %s27, 0
      %p61 = por %p59, %p60
      %p62 = scmp.ne.s32.totalorder %s51, %s54
      %p63 = scmp.eq.s32.totalorder %s32, 3
      %p64 = por %p62, %p63
      %p65 = scmp.ne.s32.totalorder %s54, %s55
      %p66 = scmp.eq.s32.totalorder %s32, 0
      %p67 = por %p65, %p66
      %p68 = scmp.ne.s32.totalorder %s54, %s55
      %p69 = scmp.eq.s32.totalorder %s33, 3
      %p70 = por %p68, %p69
      %p72 = scmp.ne.s32.totalorder %s55, %s71
      %p73 = scmp.eq.s32.totalorder %s33, 0
      %p74 = por %p72, %p73
      %s75 = ssub.s32 %s34, %s46
      %p76 = scmp.eq.s32.totalorder %s75, 0
      %s78 = sadd.s32 %s77, 1
      %s79 = scalar_select %p76, %s77, %s78
      %p82 = pneg %p76
      %p83 = scmp.eq.s32.totalorder %s27, 3
      %p84 = por %p82, %p83
      %p85 = scmp.ne.s32.totalorder %s77, %s80
      %p86 = scmp.eq.s32.totalorder %s27, 0
      %p87 = por %p85, %p86
      %p88 = scmp.ne.s32.totalorder %s77, %s80
      %p89 = scmp.eq.s32.totalorder %s32, 3
      %p90 = por %p88, %p89
      %p91 = scmp.ne.s32.totalorder %s80, %s81
      %p92 = scmp.eq.s32.totalorder %s32, 0
      %p93 = por %p91, %p92
      %p94 = scmp.ne.s32.totalorder %s80, %s81
      %p95 = scmp.eq.s32.totalorder %s33, 3
      %p96 = por %p94, %p95
      %p98 = scmp.ne.s32.totalorder %s81, %s97
      %p99 = scmp.eq.s32.totalorder %s33, 0
      %p100 = por %p98, %p99
      %s101 = ssub.s32 %s34, %s46
      %p102 = scmp.eq.s32.totalorder %s101, 0
      %s104 = sadd.s32 %s103, 1
      %s105 = scalar_select %p102, %s103, %s104
      %p108 = pneg %p102
      %p109 = scmp.eq.s32.totalorder %s27, 3
      %p110 = por %p108, %p109
      %p111 = scmp.ne.s32.totalorder %s103, %s106
      %p112 = scmp.eq.s32.totalorder %s27, 0
      %p113 = por %p111, %p112
      %p114 = scmp.ne.s32.totalorder %s103, %s106
      %p115 = scmp.eq.s32.totalorder %s32, 3
      %p116 = por %p114, %p115
      %p117 = scmp.ne.s32.totalorder %s106, %s107
      %p118 = scmp.eq.s32.totalorder %s32, 0
      %p119 = por %p117, %p118
      %p120 = scmp.ne.s32.totalorder %s106, %s107
      %p121 = scmp.eq.s32.totalorder %s33, 3
      %p122 = por %p120, %p121
      %p124 = scmp.ne.s32.totalorder %s107, %s123
      %p125 = scmp.eq.s32.totalorder %s33, 0
      %p126 = por %p124, %p125
      %s127 = ssub.s32 %s34, %s46
      %s128 = ssub.s32 %s35, %s42
      %s129 = sor.u32 %s127, %s128
      %p130 = scmp.eq.s32.totalorder %s129, 0
      %s132 = sadd.s32 %s131, 1
      %s133 = scalar_select %p130, %s131, %s132
      %p136 = pneg %p130
      %p137 = scmp.eq.s32.totalorder %s27, 3
      %p138 = por %p136, %p137
      %p139 = scmp.ne.s32.totalorder %s131, %s134
      %p140 = scmp.eq.s32.totalorder %s27, 0
      %p141 = por %p139, %p140
      %p142 = scmp.ne.s32.totalorder %s131, %s134
      %p143 = scmp.eq.s32.totalorder %s32, 3
      %p144 = por %p142, %p143
      %p145 = scmp.ne.s32.totalorder %s134, %s135
      %p146 = scmp.eq.s32.totalorder %s32, 0
      %p147 = por %p145, %p146
      %p148 = scmp.ne.s32.totalorder %s134, %s135
      %p149 = scmp.eq.s32.totalorder %s33, 3
      %p150 = por %p148, %p149
      %p152 = scmp.ne.s32.totalorder %s135, %s151
      %p153 = scmp.eq.s32.totalorder %s33, 0
      %p154 = por %p152, %p153
      %s155 = ssub.s32 %s34, %s46
      %s156 = ssub.s32 %s35, %s42
      %s157 = sor.u32 %s155, %s156
      %p158 = scmp.eq.s32.totalorder %s157, 0
      %s160 = sadd.s32 %s159, 1
      %s161 = scalar_select %p158, %s159, %s160
      %p164 = pneg %p158
      %p165 = scmp.eq.s32.totalorder %s27, 3
      %p166 = por %p164, %p165
      %p167 = scmp.ne.s32.totalorder %s159, %s162
      %p168 = scmp.eq.s32.totalorder %s27, 0
      %p169 = por %p167, %p168
      %p170 = scmp.ne.s32.totalorder %s159, %s162
      %p171 = scmp.eq.s32.totalorder %s32, 3
      %p172 = por %p170, %p171
      %p173 = scmp.ne.s32.totalorder %s162, %s163
      %p174 = scmp.eq.s32.totalorder %s32, 0
      %p175 = por %p173, %p174
      %p176 = scmp.ne.s32.totalorder %s162, %s163
      %p177 = scmp.eq.s32.totalorder %s33, 3
      %p178 = por %p176, %p177
      %p180 = scmp.ne.s32.totalorder %s163, %s179
      %p181 = scmp.eq.s32.totalorder %s33, 0
      %p182 = por %p180, %p181
      %s183 = ssub.s32 %s34, %s46
      %s184 = ssub.s32 %s35, %s42
      %s185 = sor.u32 %s183, %s184
      %p186 = scmp.eq.s32.totalorder %s185, 0
      %s188 = sadd.s32 %s187, 1
      %s189 = scalar_select %p186, %s187, %s188
      %p192 = pneg %p186
      %p193 = scmp.eq.s32.totalorder %s27, 3
      %p194 = por %p192, %p193
      %p195 = scmp.ne.s32.totalorder %s187, %s190
      %p196 = scmp.eq.s32.totalorder %s27, 0
      %p197 = por %p195, %p196
      %p198 = scmp.ne.s32.totalorder %s187, %s190
      %p199 = scmp.eq.s32.totalorder %s32, 3
      %p200 = por %p198, %p199
      %p201 = scmp.ne.s32.totalorder %s190, %s191
      %p202 = scmp.eq.s32.totalorder %s32, 0
      %p203 = por %p201, %p202
      %p204 = scmp.ne.s32.totalorder %s190, %s191
      %p205 = scmp.eq.s32.totalorder %s33, 3
      %p206 = por %p204, %p205
      %p208 = scmp.ne.s32.totalorder %s191, %s207
      %p209 = scmp.eq.s32.totalorder %s33, 0
      %p210 = por %p208, %p209
      %p211 = scmp.le.s32.totalorder 1, %s27
      %p212 = scmp.lt.s32.totalorder %s27, 5
      %p213 = pnand %p211, %p212
      %p214 = pneg %p213
      // Predicated region
      $region9: #{tpu_custom_call.1} parent=5 // pred_check
        _
      $region10: #{tpu_custom_call.1} parent=5 // pred_check_branch
        %216 = sbr.rel (%p213) target = $region12
      $region11: #{tpu_custom_call.1} parent=5 // pred_region
        %s217 = ssub.s32 %s27, 1
      $region12: #{tpu_custom_call.1} parent=5 // pred_fallthru
        _
      %p218 = scmp.lt.s32.totalorder %s27, 4
      // Predicated region
      $region13: #{tpu_custom_call.1} parent=5 // pred_check
        %p219 = pneg %p218
      $region14: #{tpu_custom_call.1} parent=5 // pred_check_branch
        %221 = sbr.rel (%p219) target = $region16
      $region15: #{tpu_custom_call.1} parent=5 // pred_region
        // Predicated region
        $region17: #{tpu_custom_call.1} parent=15 // pred_check
          %p222 = pneg %p61
        $region18: #{tpu_custom_call.1} parent=15 // pred_check_branch
          %224 = sbr.rel (%p222) target = $region20
        $region19: #{tpu_custom_call.1} parent=15 // pred_region
          %s225 = sand.u32 %s51, 1
          %s226 = scalar_lea.sflag [#allocation3], %s225
          %s227 = sand.u32 %s51, 1
          %s228 = smul.addr %s227, 8
          %s229 = scalar_lea.vmem [#allocation2], %s228
          %s231 = ssub.s32 128, 128
          %232 = vsyncadd %s226, %s231
          %s233 = sadd.s32 %s35, %s34
          %s234 = smul.addr %s233, 128
          %s235 = scalar_lea.hbm %s0, %s234
          %s237 = sshll.u32 %s229, 4
          %s238 = int_to_ptr.vmem [resolvable:$true] %s237
          %240 = dma.hbm_to_vmem [thread:$0]  %s235, 128, %s238, %s226
        $region20: #{tpu_custom_call.1} parent=15 // pred_fallthru
          _
        // Predicated region
        $region21: #{tpu_custom_call.1} parent=15 // pred_check
          %p241 = pneg %p87
        $region22: #{tpu_custom_call.1} parent=15 // pred_check_branch
          %243 = sbr.rel (%p241) target = $region24
        $region23: #{tpu_custom_call.1} parent=15 // pred_region
          %s244 = sand.u32 %s27, 1
          %s245 = scalar_lea.sflag [#allocation6], %s244
          %s246 = sand.u32 %s77, 1
          %s247 = smul.addr %s246, 8
          %s248 = scalar_lea.vmem [#allocation5], %s247
          %s250 = ssub.s32 128, 128
          %251 = vsyncadd %s245, %s250
          %s252 = smul.addr %s34, 128
          %s253 = scalar_lea.hbm %s1, %s252
          %s255 = sshll.u32 %s248, 4
          %s256 = int_to_ptr.vmem [resolvable:$true] %s255
          %258 = dma.hbm_to_vmem [thread:$0]  %s253, 128, %s256, %s245
        $region24: #{tpu_custom_call.1} parent=15 // pred_fallthru
          _
        // Predicated region
        $region25: #{tpu_custom_call.1} parent=15 // pred_check
          %p259 = pneg %p113
        $region26: #{tpu_custom_call.1} parent=15 // pred_check_branch
          %261 = sbr.rel (%p259) target = $region28
        $region27: #{tpu_custom_call.1} parent=15 // pred_region
          %s262 = sand.u32 %s27, 1
          %s263 = scalar_lea.sflag [#allocation6], %s262
          %s264 = sand.u32 %s103, 1
          %s265 = smul.addr %s264, 8
          %s266 = scalar_lea.vmem [#allocation7], %s265
          %s268 = ssub.s32 128, 128
          %269 = vsyncadd %s263, %s268
          %s270 = smul.addr %s34, 128
          %s271 = scalar_lea.hbm %s2, %s270
          %s273 = sshll.u32 %s266, 4
          %s274 = int_to_ptr.vmem [resolvable:$true] %s273
          %276 = dma.hbm_to_vmem [thread:$0]  %s271, 128, %s274, %s263
        $region28: #{tpu_custom_call.1} parent=15 // pred_fallthru
          _
        // Predicated region
        $region29: #{tpu_custom_call.1} parent=15 // pred_check
          %p277 = pneg %p141
        $region30: #{tpu_custom_call.1} parent=15 // pred_check_branch
          %279 = sbr.rel (%p277) target = $region32
        $region31: #{tpu_custom_call.1} parent=15 // pred_region
          %s280 = sand.u32 %s131, 1
          %s281 = scalar_lea.sflag [#allocation9], %s280
          %s282 = sand.u32 %s131, 1
          %s283 = smul.addr %s282, 2
          %s284 = scalar_lea.vmem [#allocation8], %s283
          %s286 = ssub.s32 32, 32
          %287 = vsyncadd %s281, %s286
          %s288 = sadd.s32 %s35, %s34
          %s289 = smul.addr %s288, 32
          %s290 = scalar_lea.hbm %s3, %s289
          %s292 = sshll.u32 %s284, 4
          %s293 = int_to_ptr.vmem [resolvable:$true] %s292
          %295 = dma.hbm_to_vmem [thread:$0]  %s290, 32, %s293, %s281
        $region32: #{tpu_custom_call.1} parent=15 // pred_fallthru
          _
      $region16: #{tpu_custom_call.1} parent=5 // pred_fallthru
        _
      %p296 = scmp.le.s32.totalorder 1, %s27
      %p297 = scmp.lt.s32.totalorder %s27, 5
      %p298 = pnand %p296, %p297
      %p299 = pneg %p298
      // Predicated region
      $region33: #{tpu_custom_call.1} parent=5 // pred_check
        _
      $region34: #{tpu_custom_call.1} parent=5 // pred_check_branch
        %301 = sbr.rel (%p298) target = $region36
      $region35: #{tpu_custom_call.1} parent=5 // pred_region
        %s302 = ssub.s32 %s27, 1
        %s303 = sand.u32 %s54, 1
        %s304 = scalar_lea.sflag [#allocation3], %s303
        %s305 = sand.u32 %s54, 1
        %s306 = smul.addr %s305, 8
        %s307 = scalar_lea.vmem [#allocation2], %s306
        // Predicated region
        $region37: #{tpu_custom_call.1} parent=35 // pred_check
          %p308 = pneg %p67
        $region38: #{tpu_custom_call.1} parent=35 // pred_check_branch
          %310 = sbr.rel (%p308) target = $region40
        $region39: #{tpu_custom_call.1} parent=35 // pred_region
          %311 = dma.done %s304, 128
        $region40: #{tpu_custom_call.1} parent=35 // pred_fallthru
          _
        %s312 = sand.u32 %s32, 1
        %s313 = scalar_lea.sflag [#allocation6], %s312
        %s314 = sand.u32 %s80, 1
        %s315 = smul.addr %s314, 8
        %s316 = scalar_lea.vmem [#allocation5], %s315
        // Predicated region
        $region41: #{tpu_custom_call.1} parent=35 // pred_check
          %p317 = pneg %p93
        $region42: #{tpu_custom_call.1} parent=35 // pred_check_branch
          %319 = sbr.rel (%p317) target = $region44
        $region43: #{tpu_custom_call.1} parent=35 // pred_region
          %320 = dma.done %s313, 128
        $region44: #{tpu_custom_call.1} parent=35 // pred_fallthru
          _
        %s321 = sand.u32 %s32, 1
        %s322 = scalar_lea.sflag [#allocation6], %s321
        %s323 = sand.u32 %s106, 1
        %s324 = smul.addr %s323, 8
        %s325 = scalar_lea.vmem [#allocation7], %s324
        // Predicated region
        $region45: #{tpu_custom_call.1} parent=35 // pred_check
          %p326 = pneg %p119
        $region46: #{tpu_custom_call.1} parent=35 // pred_check_branch
          %328 = sbr.rel (%p326) target = $region48
        $region47: #{tpu_custom_call.1} parent=35 // pred_region
          %329 = dma.done %s322, 128
        $region48: #{tpu_custom_call.1} parent=35 // pred_fallthru
          _
        %s330 = sand.u32 %s134, 1
        %s331 = scalar_lea.sflag [#allocation9], %s330
        %s332 = sand.u32 %s134, 1
        %s333 = smul.addr %s332, 2
        %s334 = scalar_lea.vmem [#allocation8], %s333
        // Predicated region
        $region49: #{tpu_custom_call.1} parent=35 // pred_check
          %p335 = pneg %p147
        $region50: #{tpu_custom_call.1} parent=35 // pred_check_branch
          %337 = sbr.rel (%p335) target = $region52
        $region51: #{tpu_custom_call.1} parent=35 // pred_region
          %338 = dma.done %s331, 32
        $region52: #{tpu_custom_call.1} parent=35 // pred_fallthru
          _
        %s339 = sand.u32 %s54, 1
        %s340 = scalar_lea.sflag [#allocation3], %s339
        %s341 = sand.u32 %s54, 1
        %s342 = smul.addr %s341, 8
        %s343 = scalar_lea.vmem [#allocation2], %s342
        %p344 = pneg %p67
        %p345 = pneg %p64
        %s346 = sand.u32 %s32, 1
        %s347 = scalar_lea.sflag [#allocation6], %s346
        %s348 = sand.u32 %s80, 1
        %s349 = smul.addr %s348, 8
        %s350 = scalar_lea.vmem [#allocation5], %s349
        %p351 = pneg %p93
        %p352 = pneg %p90
        %s353 = sand.u32 %s32, 1
        %s354 = scalar_lea.sflag [#allocation6], %s353
        %s355 = sand.u32 %s106, 1
        %s356 = smul.addr %s355, 8
        %s357 = scalar_lea.vmem [#allocation7], %s356
        %p358 = pneg %p119
        %p359 = pneg %p116
        %s360 = sand.u32 %s134, 1
        %s361 = scalar_lea.sflag [#allocation9], %s360
        %s362 = sand.u32 %s134, 1
        %s363 = smul.addr %s362, 2
        %s364 = scalar_lea.vmem [#allocation8], %s363
        %p365 = pneg %p147
        %p366 = pneg %p144
        %p367 = pneg %p175
        %p368 = pneg %p172
        %s369 = sand.u32 %s162, 1
        %s370 = scalar_lea.sflag [#allocation4], %s369
        %s371 = sand.u32 %s162, 1
        %s372 = smul.addr %s371, 8
        %s373 = scalar_lea.vmem [#allocation10], %s372
        %p374 = pneg %p203
        %p375 = pneg %p200
        %s376 = sand.u32 %s190, 1
        %s377 = scalar_lea.sflag [#allocation12], %s376
        %s378 = sand.u32 %s190, 1
        %s379 = smul.addr %s378, 8
        %s380 = scalar_lea.vmem [#allocation11], %s379
        %v383 = vld [vmem:[%s307] sm:$0xff]
        %v384 = vld [vmem:[%s316] sm:$0xff]
        %v385 = vld [vmem:[%s325] sm:$0xff]
        %v386 = vmul.f32 %v383, 0.125
        %vm387 = vcmask 523264
        %v389 = vsel %vm387, %v386, 0
        %v392 = vsel %vm387, %v384, 0
        %394 = vmatprep.subr.mxu0 0.0
        %395 = vmatpush1.xpose.msra.mxu0 0.0
        %396 = vmatprep.subr.mxu0 0.0
        %397 = vmatpush1.xpose.msra.mxu0 0.0
        %398 = vmatprep.subr.mxu0 0.0
        %399 = vmatpush1.xpose.msra.mxu0 0.0
        %400 = vmatprep.subr.mxu0 0.0
        %401 = vmatpush1.xpose.msra.mxu0 0.0
        %402 = vmatprep.subr.mxu0 0.0
        %403 = vmatpush1.xpose.msra.mxu0 0.0
        %404 = vmatprep.subr.mxu0 0.0
        %405 = vmatpush1.xpose.msra.mxu0 0.0
        %406 = vmatprep.subr.mxu0 0.0
        %407 = vmatpush1.xpose.msra.mxu0 0.0
        %408 = vmatprep.subr.mxu0 0.0
        %409 = vmatpush1.xpose.msra.mxu0 0.0
        %410 = vmatprep.subr.mxu0 0.0
        %411 = vmatpush1.xpose.msra.mxu0 0.0
        %412 = vmatprep.subr.mxu0 0.0
        %413 = vmatpush1.xpose.msra.mxu0 0.0
        %414 = vmatprep.subr.mxu0 0.0
        %415 = vmatpush1.xpose.msra.mxu0 0.0
        %416 = vmatprep.subr.mxu0 0.0
        %417 = vmatpush1.xpose.msra.mxu0 0.0
        %418 = vmatprep.subr.mxu0 0.0
        %419 = vmatpush1.xpose.msra.mxu0 0.0
        %420 = vmatprep.subr.mxu0 0.0
        %421 = vmatpush1.xpose.msra.mxu0 0.0
        %422 = vmatprep.subr.mxu0 0.0
        %423 = vmatpush1.xpose.msra.mxu0 0.0
        %424 = vmatprep.subr.mxu0 0.0
        %425 = vmatpush1.xpose.msra.mxu0 %v392
        %426 = vmatprep.subr.mxu0 0.0
        %427 = vmatpush2.xpose.msra.mxu0 0.0
        %428 = vmatprep.subr.mxu0 0.0
        %429 = vmatpush2.xpose.msra.mxu0 0.0
        %430 = vmatprep.subr.mxu0 0.0
        %431 = vmatpush2.xpose.msra.mxu0 0.0
        %432 = vmatprep.subr.mxu0 0.0
        %433 = vmatpush2.xpose.msra.mxu0 0.0
        %434 = vmatprep.subr.mxu0 0.0
        %435 = vmatpush2.xpose.msra.mxu0 0.0
        %436 = vmatprep.subr.mxu0 0.0
        %437 = vmatpush2.xpose.msra.mxu0 0.0
        %438 = vmatprep.subr.mxu0 0.0
        %439 = vmatpush2.xpose.msra.mxu0 0.0
        %440 = vmatprep.subr.mxu0 0.0
        %441 = vmatpush2.xpose.msra.mxu0 0.0
        %442 = vmatprep.subr.mxu0 0.0
        %443 = vmatpush2.xpose.msra.mxu0 0.0
        %444 = vmatprep.subr.mxu0 0.0
        %445 = vmatpush2.xpose.msra.mxu0 0.0
        %446 = vmatprep.subr.mxu0 0.0
        %447 = vmatpush2.xpose.msra.mxu0 0.0
        %448 = vmatprep.subr.mxu0 0.0
        %449 = vmatpush2.xpose.msra.mxu0 0.0
        %450 = vmatprep.subr.mxu0 0.0
        %451 = vmatpush2.xpose.msra.mxu0 0.0
        %452 = vmatprep.subr.mxu0 0.0
        %453 = vmatpush2.xpose.msra.mxu0 0.0
        %454 = vmatprep.subr.mxu0 0.0
        %455 = vmatpush2.xpose.msra.mxu0 0.0
        %456 = vmatprep.subr.mxu0 0.0
        %457 = vmatpush2.xpose.msra.mxu0 0.0
        %458 = vmatprep.mubr.f32.mxu0 0.0
        %459 = vmatmul.mubr.f32.gmra.mxu0 %v389
        %v460 = vpop.f32.mrf.mxu0
        %v461 = vadd.f32 0.0, %v460
        %v462 = vpop.f32.mrf.mxu0
        %463 = vdwg.mxu0
        %v464 = vld [vmem:[%s334] sm:$0x3]
        %vm465 = vnez %v464
        %v466 = vsel %vm465, 16843009, 0
        %v467 = vunpack.c.0.s8 %v466
        %vm468 = vcmp.ne.s32.totalorder %v467, 0
        %v469 = vsel %vm468, -1e+09, %v461
        %vm470 = vcmask 64512
        %v471 = vsel %vm470, %v469, -inf
        %472 = vmax.xlane.f32.xlu0 %v471
        %v473 = vpop.xlane.xlu0 %472
        %v474 = vsub.f32 %v469, %v473
        %v475 = vmul.f32 %v474, 1.442695
        %v476 = vpow.pop %v475
        %v478 = vsel %vm470, %v476, 0
        %480 = vmatprep.subr.mxu0 0.0
        %481 = vmatpush1.msra.mxu0 0.0
        %482 = vmatprep.subr.mxu0 0.0
        %483 = vmatpush1.msra.mxu0 0.0
        %484 = vmatprep.subr.mxu0 0.0
        %485 = vmatpush1.msra.mxu0 0.0
        %486 = vmatprep.subr.mxu0 0.0
        %487 = vmatpush1.msra.mxu0 0.0
        %488 = vmatprep.subr.mxu0 0.0
        %489 = vmatpush1.msra.mxu0 0.0
        %490 = vmatprep.subr.mxu0 0.0
        %491 = vmatpush1.msra.mxu0 0.0
        %492 = vmatprep.subr.mxu0 0.0
        %493 = vmatpush1.msra.mxu0 0.0
        %494 = vmatprep.subr.mxu0 0.0
        %495 = vmatpush1.msra.mxu0 0.0
        %496 = vmatprep.subr.mxu0 0.0
        %497 = vmatpush1.msra.mxu0 0.0
        %498 = vmatprep.subr.mxu0 0.0
        %499 = vmatpush1.msra.mxu0 0.0
        %500 = vmatprep.subr.mxu0 0.0
        %501 = vmatpush1.msra.mxu0 0.0
        %502 = vmatprep.subr.mxu0 0.0
        %503 = vmatpush1.msra.mxu0 0.0
        %504 = vmatprep.subr.mxu0 0.0
        %505 = vmatpush1.msra.mxu0 0.0
        %506 = vmatprep.subr.mxu0 0.0
        %507 = vmatpush1.msra.mxu0 0.0
        %508 = vmatprep.subr.mxu0 0.0
        %509 = vmatpush1.msra.mxu0 0.0
        %510 = vmatprep.subr.mxu0 0.0
        %511 = vmatpush1.msra.mxu0 %v385
        %512 = vmatprep.subr.mxu0 0.0
        %513 = vmatpush2.msra.mxu0 0.0
        %514 = vmatprep.subr.mxu0 0.0
        %515 = vmatpush2.msra.mxu0 0.0
        %516 = vmatprep.subr.mxu0 0.0
        %517 = vmatpush2.msra.mxu0 0.0
        %518 = vmatprep.subr.mxu0 0.0
        %519 = vmatpush2.msra.mxu0 0.0
        %520 = vmatprep.subr.mxu0 0.0
        %521 = vmatpush2.msra.mxu0 0.0
        %522 = vmatprep.subr.mxu0 0.0
        %523 = vmatpush2.msra.mxu0 0.0
        %524 = vmatprep.subr.mxu0 0.0
        %525 = vmatpush2.msra.mxu0 0.0
        %526 = vmatprep.subr.mxu0 0.0
        %527 = vmatpush2.msra.mxu0 0.0
        %528 = vmatprep.subr.mxu0 0.0
        %529 = vmatpush2.msra.mxu0 0.0
        %530 = vmatprep.subr.mxu0 0.0
        %531 = vmatpush2.msra.mxu0 0.0
        %532 = vmatprep.subr.mxu0 0.0
        %533 = vmatpush2.msra.mxu0 0.0
        %534 = vmatprep.subr.mxu0 0.0
        %535 = vmatpush2.msra.mxu0 0.0
        %536 = vmatprep.subr.mxu0 0.0
        %537 = vmatpush2.msra.mxu0 0.0
        %538 = vmatprep.subr.mxu0 0.0
        %539 = vmatpush2.msra.mxu0 0.0
        %540 = vmatprep.subr.mxu0 0.0
        %541 = vmatpush2.msra.mxu0 0.0
        %542 = vmatprep.subr.mxu0 0.0
        %543 = vmatpush2.msra.mxu0 0.0
        %544 = vmatprep.mubr.f32.mxu0 0.0
        %545 = vmatmul.mubr.f32.gmra.mxu0 %v478
        %v546 = vpop.f32.mrf.mxu0
        %v547 = vadd.f32 0.0, %v546
        %v548 = vpop.f32.mrf.mxu0
        %549 = vdwg.mxu0
        %v550 = vrcp.pop %v547
        %552 = vset.pattern.permute.xlu0 64
        %553 = vperm.xlu0 %552, %v550
        %v554 = vpop.permute.xlu0 %553
        %v556 = vmul.f32 %v547, %v554
        %557 = vst.msk [vmem:[%s373] sm:$0xff] %vm387, %v556
        %v558 = vmul.f32 %v476, %v554
        %559 = vst.msk [vmem:[%s380] sm:$0xff] %vm470, %v558
        %s560 = sand.u32 %s162, 1
        %s561 = scalar_lea.sflag [#allocation4], %s560
        %s562 = sand.u32 %s162, 1
        %s563 = smul.addr %s562, 8
        %s564 = scalar_lea.vmem [#allocation10], %s563
        %s565 = sand.u32 %s190, 1
        %s566 = scalar_lea.sflag [#allocation12], %s565
        %s567 = sand.u32 %s190, 1
        %s568 = smul.addr %s567, 8
        %s569 = scalar_lea.vmem [#allocation11], %s568
        // Predicated region
        $region53: #{tpu_custom_call.1} parent=35 // pred_check
          %p570 = pneg %p172
        $region54: #{tpu_custom_call.1} parent=35 // pred_check_branch
          %572 = sbr.rel (%p570) target = $region56
        $region55: #{tpu_custom_call.1} parent=35 // pred_region
          %s574 = ssub.s32 128, 128
          %575 = vsyncadd %s561, %s574
          %s576 = sadd.s32 %s37, %s36
          %s577 = smul.addr %s576, 128
          %s578 = scalar_lea.hbm %s4, %s577
          %s580 = sshll.u32 %s564, 4
          %s581 = int_to_ptr.vmem [resolvable:$true] %s580
          %583 = dma.vmem_to_hbm [thread:$0]  %s581, 128, %s578, %s561
        $region56: #{tpu_custom_call.1} parent=35 // pred_fallthru
          _
        // Predicated region
        $region57: #{tpu_custom_call.1} parent=35 // pred_check
          %p584 = pneg %p200
        $region58: #{tpu_custom_call.1} parent=35 // pred_check_branch
          %586 = sbr.rel (%p584) target = $region60
        $region59: #{tpu_custom_call.1} parent=35 // pred_region
          %s588 = ssub.s32 128, 128
          %589 = vsyncadd %s566, %s588
          %s590 = sadd.s32 %s37, %s36
          %s591 = smul.addr %s590, 128
          %s592 = scalar_lea.hbm %s5, %s591
          %s594 = sshll.u32 %s569, 4
          %s595 = int_to_ptr.vmem [resolvable:$true] %s594
          %597 = dma.vmem_to_hbm [thread:$0]  %s595, 128, %s592, %s566
        $region60: #{tpu_custom_call.1} parent=35 // pred_fallthru
          _
      $region36: #{tpu_custom_call.1} parent=5 // pred_fallthru
        _
      %p598 = scmp.le.s32.totalorder 2, %s27
      // Predicated region
      $region61: #{tpu_custom_call.1} parent=5 // pred_check
        %p599 = pneg %p598
      $region62: #{tpu_custom_call.1} parent=5 // pred_check_branch
        %601 = sbr.rel (%p599) target = $region64
      $region63: #{tpu_custom_call.1} parent=5 // pred_region
        %s602 = ssub.s32 %s27, 2
        // Predicated region
        $region65: #{tpu_custom_call.1} parent=63 // pred_check
          %p603 = pneg %p178
        $region66: #{tpu_custom_call.1} parent=63 // pred_check_branch
          %605 = sbr.rel (%p603) target = $region68
        $region67: #{tpu_custom_call.1} parent=63 // pred_region
          %s606 = sand.u32 %s163, 1
          %s607 = scalar_lea.sflag [#allocation4], %s606
          %s608 = sand.u32 %s163, 1
          %s609 = smul.addr %s608, 8
          %s610 = scalar_lea.vmem [#allocation10], %s609
          %611 = dma.done %s607, 128
        $region68: #{tpu_custom_call.1} parent=63 // pred_fallthru
          _
        // Predicated region
        $region69: #{tpu_custom_call.1} parent=63 // pred_check
          %p612 = pneg %p206
        $region70: #{tpu_custom_call.1} parent=63 // pred_check_branch
          %614 = sbr.rel (%p612) target = $region72
        $region71: #{tpu_custom_call.1} parent=63 // pred_region
          %s615 = sand.u32 %s191, 1
          %s616 = scalar_lea.sflag [#allocation12], %s615
          %s617 = sand.u32 %s191, 1
          %s618 = smul.addr %s617, 8
          %s619 = scalar_lea.vmem [#allocation11], %s618
          %620 = dma.done %s616, 128
        $region72: #{tpu_custom_call.1} parent=63 // pred_fallthru
          _
      $region64: #{tpu_custom_call.1} parent=5 // pred_fallthru
        _
    $region6: #{tpu_custom_call.1} parent=1 // loop_footer
      %s31 = sadd.s32 1, %s27
    $region7: #{tpu_custom_call.1} parent=1 // loop_footer_branch
      %26 = sbr.rel target = $region3
    $region8: #{tpu_custom_call.1} parent=1 // loop_exit
      _
    %621 = vsyncpa [#allocation3], 1
    %s622 = scalar_lea.sflag [#allocation3], 1
    %623 = vsyncpa %s622, 1
    %624 = vsyncpa [#allocation6], 1
    %s625 = scalar_lea.sflag [#allocation6], 1
    %626 = vsyncpa %s625, 1
    %627 = vsyncpa [#allocation9], 1
    %s628 = scalar_lea.sflag [#allocation9], 1
    %629 = vsyncpa %s628, 1
    %630 = vsyncpa [#allocation4], 1
    %s631 = scalar_lea.sflag [#allocation4], 1
    %632 = vsyncpa %s631, 1
    %633 = vsyncpa [#allocation12], 1
    %s634 = scalar_lea.sflag [#allocation12], 1
    %635 = vsyncpa %s634, 1

</llo_original>
